<compile_context>
chip_gen: v5e
topology: v5e:2x2
jax: 0.10.0
libtpu: 0.0.40
codegen_flags: <defaults>
</compile_context>

<pallas_src>
import jax
import jax.numpy as jnp
from jax.experimental import pallas as pl
from jax.experimental.pallas import tpu as pltpu


# ----------------------------------------------------------------------------
# Kernel body
# ----------------------------------------------------------------------------
def _make_kernel(passthrough_width):
    """Build the kernel; `passthrough_width` = original d_model (lanes of patch 0)."""

    def _affine_fwd_kernel(x_ref, mu_ref, alpha_ref, out_ref):
        # Block shape is (TB, TN, Dlane).
        xf = x_ref[...].astype(jnp.float32)
        mu = mu_ref[...].astype(jnp.float32)
        alpha = alpha_ref[...].astype(jnp.float32)

        # exp(-clamp(alpha, -10, 10)) == exp(clamp(-alpha, -10, 10)).
        scale = jnp.exp(jnp.clip(-alpha, -10.0, 10.0))
        out_ref[...] = ((xf - mu) * scale).astype(out_ref.dtype)

        # Patch-0 passthrough: only the block owning row 0 of the patches axis
        # pays for it. Patch 0 occupies lanes [0:passthrough_width) of row 0
        # (equal to the full lane dim unless patches were lane-grouped).
        @pl.when(pl.program_id(1) == 0)
        def _():
            out_ref[:, 0, 0:passthrough_width] = x_ref[:, 0, 0:passthrough_width]

    return _affine_fwd_kernel


# ----------------------------------------------------------------------------
# Tiling heuristics
# ----------------------------------------------------------------------------
_SAFE_TILE_BYTES = (3 << 20) // 2   # 1.5 MiB: ~8 live buffers < v5e's 16 MiB scoped VMEM
_LARGE_TILE_BYTES = 3 << 20         # 3.0 MiB: ~8 live buffers ~ 24 MiB < 32 MiB (v6e/v7x)


def _tile_byte_budget():
    """Per-tile byte budget; conservative default, larger on v6e/v7x."""
    budget = _SAFE_TILE_BYTES
    try:
        info = pltpu.get_tpu_info()
        tag = " ".join(
            str(getattr(info, a, ""))
            for a in ("chip_version", "version", "generation", "chip_name", "name")
        )
        tag = (tag + " " + str(info)).lower()
        vmem = getattr(info, "vmem_capacity_bytes", None)
        if vmem is not None and vmem <= (64 << 20):
            # v7x-class chip (64 MiB physical, 32 MiB scoped default).
            budget = _LARGE_TILE_BYTES
        elif ("v5" not in tag) and any(t in tag for t in ("v6", "v7", "trillium")):
            budget = _LARGE_TILE_BYTES
    except Exception:
        pass  # unknown hardware: keep the safe budget (still ~85% of HBM roofline)
    return budget


def _choose_blocks(B, N, D, itemsize):
    """Pick (TB, TN) for block (TB, TN, D) under the per-tile byte budget."""
    budget = _tile_byte_budget()
    # Sublane rows per vreg for this dtype: 8 (f32) / 16 (bf16) / 32 (int8, fp8).
    pack = max(8, 32 // max(1, itemsize))
    row_bytes = N * D * itemsize  # one batch slab

    if row_bytes <= budget:
        # Whole patches axis in one contiguous block; grow along batch.
        tb = min(B, max(1, budget // row_bytes))
        # Keep >= min(B, 8) grid steps so a 2-TC chip (v7x) shards the grid.
        target_steps = min(B, 8)
        tb = min(tb, max(1, B // target_steps))
        tn = N
    else:
        # One batch slab already exceeds the budget: tile within the patch axis.
        tb = 1
        tn = min(N, max(1, budget // (D * itemsize)))
        if tn < N:
            tn = max(pack, (tn // pack) * pack)
    return tb, tn


# ----------------------------------------------------------------------------
# Wrapper
# ----------------------------------------------------------------------------
def affine_transform_forward(x, mu, alpha, *, donate_x=False):
    """Forward affine transform: (B, N, D) -> (B, N, D)."""
    B, N, D = x.shape
    assert mu.shape == (B, N, D) and alpha.shape == (B, N, D)
    out_dtype = x.dtype
    itemsize = jnp.dtype(x.dtype).itemsize

    # Lane-density plumbing: if d_model is narrower than one lane vector and
    # divides 128, merge g = 128 // D patches per row so the lane dim is 128
    # and the bulk store is unmasked. Pure reshape (the op is elementwise
    # except for patch 0, which stays at lanes [0:D) of row 0).
    passthrough_width = D
    n_eff, d_eff, grouped = N, D, False
    if D % 128 != 0 and D < 128 and 128 % D == 0 and N % (128 // D) == 0:
        g = 128 // D
        n_eff, d_eff, grouped = N // g, g * D, True
        x = x.reshape(B, n_eff, d_eff)
        mu = mu.reshape(B, n_eff, d_eff)
        alpha = alpha.reshape(B, n_eff, d_eff)
    # Other non-multiple-of-128 d_model values fall through to the plain path:
    # still correct, just lane-masked stores (realistic TARFlow d_model is a
    # multiple of 128, so the fast path is the common case).

    tb, tn = _choose_blocks(B, n_eff, d_eff, itemsize)
    grid = (pl.cdiv(B, tb), pl.cdiv(n_eff, tn))
    spec = pl.BlockSpec((tb, tn, d_eff), lambda b, n: (b, n, 0))

    total = B * N * D
    out = pl.pallas_call(
        _make_kernel(passthrough_width),
        out_shape=jax.ShapeDtypeStruct((B, n_eff, d_eff), out_dtype),
        grid_spec=pltpu.PrefetchScalarGridSpec(
            num_scalar_prefetch=0,
            grid=grid,
            in_specs=[spec, spec, spec],
            out_specs=spec,
        ),
        compiler_params=pltpu.CompilerParams(
            # Elementwise op: both grid axes fully independent -> megacore-friendly.
            dimension_semantics=("parallel", "parallel"),
        ),
        cost_estimate=pl.CostEstimate(
            flops=3 * total,
            transcendentals=total,
            bytes_accessed=4 * total * itemsize,  # 3 inputs streamed + 1 output
        ),
        # Optionally reuse x's HBM buffer for the output (caller must donate x).
        input_output_aliases=({0: 0} if donate_x else {}),
    )(x, mu, alpha)

    if grouped:
        out = out.reshape(B, N, D)
    return out


def affine_transform_forward_ref(x, mu, alpha):
    """Pure-JAX reference mirroring the PyTorch forward."""
    alpha = jnp.clip(alpha, -10.0, 10.0)
    y = (x - mu) * jnp.exp(-alpha)
    return y.at[:, 0, :].set(x[:, 0, :])


if __name__ == "__main__":
    # Small shapes consistent with the module: (bsize, num_patches, d_model).
    B, N, D = 2, 8, 32
    key = jax.random.PRNGKey(0)
    kx, kmu, ka = jax.random.split(key, 3)

    # mu/alpha come from learned (linear, gelu, linear) heads upstream; here
    # they are deterministic synthetic inputs with the expected shapes.
    x = jax.random.normal(kx, (B, N, D), dtype=jnp.float32)
    mu = jax.random.normal(kmu, (B, N, D), dtype=jnp.float32)
    # Scale alpha so the clamp branch is also exercised.
    alpha = 12.0 * jax.random.normal(ka, (B, N, D), dtype=jnp.float32)

    out = affine_transform_forward(x, mu, alpha)
    jax.block_until_ready(out)

    ref = affine_transform_forward_ref(x, mu, alpha)
    assert out.shape == (B, N, D)
    assert out.dtype == x.dtype
    assert jnp.allclose(out, ref, atol=1e-5, rtol=1e-5)

    print("KERNEL_OK")
</pallas_src>

<mosaic_0001>
module attributes {stable_mosaic.version = 11 : i64} {
  func.func @_affine_fwd_kernel(%arg0: i32, %arg1: i32, %arg2: memref<1x2x128xf32, #tpu.memory_space<vmem>>, %arg3: memref<1x2x128xf32, #tpu.memory_space<vmem>>, %arg4: memref<1x2x128xf32, #tpu.memory_space<vmem>>, %arg5: memref<1x2x128xf32, #tpu.memory_space<vmem>>) attributes {dimension_semantics = [#tpu.dimension_semantics<parallel>, #tpu.dimension_semantics<parallel>], iteration_bounds = array<i64: 2, 1>, scalar_prefetch = 0 : i64, scratch_operands = 0 : i64, tpu.core_type = #tpu.core_type<tc>, window_params = [{transform_indices = @transform_0, window_bounds = array<i64: 1, 2, 128>}, {transform_indices = @transform_1, window_bounds = array<i64: 1, 2, 128>}, {transform_indices = @transform_2, window_bounds = array<i64: 1, 2, 128>}, {transform_indices = @transform_3, window_bounds = array<i64: 1, 2, 128>}]} {
    %c0 = arith.constant 0 : index
    %c0_0 = arith.constant 0 : index
    %c0_1 = arith.constant 0 : index
    %0 = vector.load %arg2[%c0, %c0_0, %c0_1] : memref<1x2x128xf32, #tpu.memory_space<vmem>>, vector<1x2x128xf32>
    %c0_2 = arith.constant 0 : index
    %c0_3 = arith.constant 0 : index
    %c0_4 = arith.constant 0 : index
    %1 = vector.load %arg3[%c0_2, %c0_3, %c0_4] : memref<1x2x128xf32, #tpu.memory_space<vmem>>, vector<1x2x128xf32>
    %c0_5 = arith.constant 0 : index
    %c0_6 = arith.constant 0 : index
    %c0_7 = arith.constant 0 : index
    %2 = vector.load %arg4[%c0_5, %c0_6, %c0_7] : memref<1x2x128xf32, #tpu.memory_space<vmem>>, vector<1x2x128xf32>
    %cst = arith.constant 0.000000e+00 : f32
    %3 = vector.broadcast %cst : f32 to vector<1x2x128xf32>
    %4 = arith.subf %3, %2 : vector<1x2x128xf32>
    %cst_8 = arith.constant -1.000000e+01 : f32
    %cst_9 = arith.constant 1.000000e+01 : f32
    %5 = vector.broadcast %cst_8 : f32 to vector<1x2x128xf32>
    %6 = arith.maximumf %5, %4 : vector<1x2x128xf32>
    %7 = vector.broadcast %cst_9 : f32 to vector<1x2x128xf32>
    %8 = arith.minimumf %7, %6 : vector<1x2x128xf32>
    %9 = math.exp %8 : vector<1x2x128xf32>
    %10 = arith.subf %0, %1 : vector<1x2x128xf32>
    %11 = arith.mulf %10, %9 : vector<1x2x128xf32>
    %c0_10 = arith.constant 0 : index
    %c0_11 = arith.constant 0 : index
    %c0_12 = arith.constant 0 : index
    %12 = vector.load %arg5[%c0_10, %c0_11, %c0_12] : memref<1x2x128xf32, #tpu.memory_space<vmem>>, vector<1x2x128xf32>
    tpu.vector_store %arg5[%c0_10, %c0_11, %c0_12], %11 {strides = array<i32>} : memref<1x2x128xf32, #tpu.memory_space<vmem>>, vector<1x2x128xf32>,
    %c0_i32 = arith.constant 0 : i32
    %13 = arith.cmpi eq, %arg1, %c0_i32 : i32
    %14 = arith.extui %13 : i1 to i32
    %c0_i32_13 = arith.constant 0 : i32
    %15 = arith.cmpi ne, %14, %c0_i32_13 : i32
    scf.if %15 {
      %c0_14 = arith.constant 0 : index
      %c0_15 = arith.constant 0 : index
      %c0_16 = arith.constant 0 : index
      %16 = vector.load %arg2[%c0_14, %c0_15, %c0_16] : memref<1x2x128xf32, #tpu.memory_space<vmem>>, vector<1x1x32xf32>
      %17 = vector.shape_cast %16 : vector<1x1x32xf32> to vector<1x32xf32>
      %c0_17 = arith.constant 0 : index
      %c0_18 = arith.constant 0 : index
      %c0_19 = arith.constant 0 : index
      %18 = vector.load %arg5[%c0_17, %c0_18, %c0_19] : memref<1x2x128xf32, #tpu.memory_space<vmem>>, vector<1x1x32xf32>
      %19 = vector.shape_cast %18 : vector<1x1x32xf32> to vector<1x32xf32>
      %20 = vector.shape_cast %17 : vector<1x32xf32> to vector<1x1x32xf32>
      tpu.vector_store %arg5[%c0_17, %c0_18, %c0_19], %20 {strides = array<i32>} : memref<1x2x128xf32, #tpu.memory_space<vmem>>, vector<1x1x32xf32>,
    } else {
    }
    return
  }
  func.func @transform_0(%arg0: i32, %arg1: i32) -> (i32, i32, i32) {
    %c0_i32 = arith.constant 0 : i32
    %c0_i32_0 = arith.constant 0 : i32
    return %arg0, %arg1, %c0_i32 : i32, i32, i32
  }
  func.func @transform_1(%arg0: i32, %arg1: i32) -> (i32, i32, i32) {
    %c0_i32 = arith.constant 0 : i32
    %c0_i32_0 = arith.constant 0 : i32
    return %arg0, %arg1, %c0_i32 : i32, i32, i32
  }
  func.func @transform_2(%arg0: i32, %arg1: i32) -> (i32, i32, i32) {
    %c0_i32 = arith.constant 0 : i32
    %c0_i32_0 = arith.constant 0 : i32
    return %arg0, %arg1, %c0_i32 : i32, i32, i32
  }
  func.func @transform_3(%arg0: i32, %arg1: i32) -> (i32, i32, i32) {
    %c0_i32 = arith.constant 0 : i32
    %c0_i32_0 = arith.constant 0 : i32
    return %arg0, %arg1, %c0_i32 : i32, i32, i32
  }
}

</mosaic_0001>

<llo_original>
// kernel: tpu_custom_call.1
$region0: #{tpu_custom_call.1}
  #allocation0 [shape = 'u32[]', space=smem, size = 0x4, offset = 0x4, fixed_abs, tag = 'smem constant byte address 0x4 - core index']
  #allocation1 [shape = 'u32[72,128]{1,0:T(1,128)}', space=vmem, size = 0x9000, scoped, tag = 'internal scratch']
  %s0 = inlined_call_operand.hbm [shape: f32[2,2,128], index: 0, kind: input, shape index: {}]
  %s1 = inlined_call_operand.hbm [shape: f32[2,2,128], index: 1, kind: input, shape index: {}]
  %s2 = inlined_call_operand.hbm [shape: f32[2,2,128], index: 2, kind: input, shape index: {}]
  %s3 = inlined_call_operand.hbm [shape: f32[2,2,128], index: 3, kind: output, shape index: {}]
  %s4 = sld [smem:[#allocation0]]
  $region61: #{tpu_custom_call.1} parent=0
    _
  %s6 = ssub.s32 1, %s4
  %s7 = scalar_select 0, %s6, %s4
  $region1: #{tpu_custom_call.1} parent=0
    #allocation2 [shape = 'u8[2048]{0}', space=vmem, size = 0x800, scoped, tag = 'input window, operand 0']
    #allocation3 [shape = 's32[2]{0}', space=sflag, size = 0x8, scoped, tag = 'scoped memory for tpu_custom_call.1']
    #allocation4 [shape = 's32[2]{0}', space=sflag, size = 0x8, scoped, tag = 'scoped memory for tpu_custom_call.1']
    #allocation5 [shape = 'u8[2048]{0}', space=vmem, size = 0x800, scoped, tag = 'input window, operand 1']
    #allocation6 [shape = 's32[2]{0}', space=sflag, size = 0x8, scoped, tag = 'scoped memory for tpu_custom_call.1']
    #allocation7 [shape = 'u8[2048]{0}', space=vmem, size = 0x800, scoped, tag = 'input window, operand 2']
    #allocation8 [shape = 'u8[2048]{0}', space=vmem, size = 0x800, scoped, tag = 'output window, operand 0']
    %8 = vsyncpa [#allocation3], 0
    %s9 = scalar_lea.sflag [#allocation3], 1
    %10 = vsyncpa %s9, 0
    %11 = vsyncpa [#allocation6], 0
    %s12 = scalar_lea.sflag [#allocation6], 1
    %13 = vsyncpa %s12, 0
    %14 = vsyncpa [#allocation4], 0
    %s15 = scalar_lea.sflag [#allocation4], 1
    %16 = vsyncpa %s15, 0
    loop: start=0, step=1, limit=4
    $region2: #{tpu_custom_call.1} parent=1 // loop_pre_header
      _
    $region3: #{tpu_custom_call.1} parent=1 // loop_header
      %s18 = sphi 0, %s22
      %p19 = scmp.ge.s32.totalorder %s18, 4
      %s25 = sphi 0, %s37
      %s26 = sphi 0, %s33
      %s27 = sphi 0, %s25
      %s28 = sphi 0, %s26
      %s29 = sphi 0, %s27
      %s30 = sphi 0, %s28
      %s42 = sphi 0, %s44
      %s45 = sphi 0, %s42
      %s46 = sphi 0, %s45
      %s62 = sphi 0, %s46
      %s70 = sphi 0, %s72
      %s73 = sphi 0, %s70
      %s74 = sphi 0, %s73
      %s90 = sphi 0, %s74
      %s98 = sphi 0, %s100
      %s101 = sphi 0, %s98
      %s102 = sphi 0, %s101
      %s118 = sphi 0, %s102
      %s126 = sphi 0, %s128
      %s129 = sphi 0, %s126
      %s130 = sphi 0, %s129
      %s146 = sphi 0, %s130
    $region4: #{tpu_custom_call.1} parent=1 // loop_header_branch
      %21 = sbr.rel (%p19) target = $region8
    $region5: #{tpu_custom_call.1} parent=1 // loop_body
      %s23 = ssub.s32 %s18, 1
      %s24 = ssub.s32 %s18, 2
      %s31 = sadd.s32 1, %s26
      %p32 = scmp.ge.s32.totalorder %s31, 1
      %s33 = scalar_select %p32, 0, %s31
      %s34 = sadd.s32 1, %s25
      %s35 = scalar_select %p32, %s34, %s25
      %p36 = scmp.ge.s32.totalorder %s35, 2
      %s37 = scalar_select %p36, 0, %s35
      %s38 = ssub.s32 %s25, %s37
      %s39 = ssub.s32 %s26, %s33
      %s40 = sor.u32 %s38, %s39
      %p41 = scmp.eq.s32.totalorder %s40, 0
      %s43 = sadd.s32 %s42, 1
      %s44 = scalar_select %p41, %s42, %s43
      %p47 = pneg %p41
      %p48 = scmp.eq.s32.totalorder %s18, 1
      %p49 = por %p47, %p48
      %p50 = scmp.ne.s32.totalorder %s42, %s45
      %p51 = scmp.eq.s32.totalorder %s18, 0
      %p52 = por %p50, %p51
      %p53 = scmp.ne.s32.totalorder %s42, %s45
      %p54 = scmp.eq.s32.totalorder %s23, 1
      %p55 = por %p53, %p54
      %p56 = scmp.ne.s32.totalorder %s45, %s46
      %p57 = scmp.eq.s32.totalorder %s23, 0
      %p58 = por %p56, %p57
      %p59 = scmp.ne.s32.totalorder %s45, %s46
      %p60 = scmp.eq.s32.totalorder %s24, 1
      %p61 = por %p59, %p60
      %p63 = scmp.ne.s32.totalorder %s46, %s62
      %p64 = scmp.eq.s32.totalorder %s24, 0
      %p65 = por %p63, %p64
      %s66 = ssub.s32 %s25, %s37
      %s67 = ssub.s32 %s26, %s33
      %s68 = sor.u32 %s66, %s67
      %p69 = scmp.eq.s32.totalorder %s68, 0
      %s71 = sadd.s32 %s70, 1
      %s72 = scalar_select %p69, %s70, %s71
      %p75 = pneg %p69
      %p76 = scmp.eq.s32.totalorder %s18, 1
      %p77 = por %p75, %p76
      %p78 = scmp.ne.s32.totalorder %s70, %s73
      %p79 = scmp.eq.s32.totalorder %s18, 0
      %p80 = por %p78, %p79
      %p81 = scmp.ne.s32.totalorder %s70, %s73
      %p82 = scmp.eq.s32.totalorder %s23, 1
      %p83 = por %p81, %p82
      %p84 = scmp.ne.s32.totalorder %s73, %s74
      %p85 = scmp.eq.s32.totalorder %s23, 0
      %p86 = por %p84, %p85
      %p87 = scmp.ne.s32.totalorder %s73, %s74
      %p88 = scmp.eq.s32.totalorder %s24, 1
      %p89 = por %p87, %p88
      %p91 = scmp.ne.s32.totalorder %s74, %s90
      %p92 = scmp.eq.s32.totalorder %s24, 0
      %p93 = por %p91, %p92
      %s94 = ssub.s32 %s25, %s37
      %s95 = ssub.s32 %s26, %s33
      %s96 = sor.u32 %s94, %s95
      %p97 = scmp.eq.s32.totalorder %s96, 0
      %s99 = sadd.s32 %s98, 1
      %s100 = scalar_select %p97, %s98, %s99
      %p103 = pneg %p97
      %p104 = scmp.eq.s32.totalorder %s18, 1
      %p105 = por %p103, %p104
      %p106 = scmp.ne.s32.totalorder %s98, %s101
      %p107 = scmp.eq.s32.totalorder %s18, 0
      %p108 = por %p106, %p107
      %p109 = scmp.ne.s32.totalorder %s98, %s101
      %p110 = scmp.eq.s32.totalorder %s23, 1
      %p111 = por %p109, %p110
      %p112 = scmp.ne.s32.totalorder %s101, %s102
      %p113 = scmp.eq.s32.totalorder %s23, 0
      %p114 = por %p112, %p113
      %p115 = scmp.ne.s32.totalorder %s101, %s102
      %p116 = scmp.eq.s32.totalorder %s24, 1
      %p117 = por %p115, %p116
      %p119 = scmp.ne.s32.totalorder %s102, %s118
      %p120 = scmp.eq.s32.totalorder %s24, 0
      %p121 = por %p119, %p120
      %s122 = ssub.s32 %s25, %s37
      %s123 = ssub.s32 %s26, %s33
      %s124 = sor.u32 %s122, %s123
      %p125 = scmp.eq.s32.totalorder %s124, 0
      %s127 = sadd.s32 %s126, 1
      %s128 = scalar_select %p125, %s126, %s127
      %p131 = pneg %p125
      %p132 = scmp.eq.s32.totalorder %s18, 1
      %p133 = por %p131, %p132
      %p134 = scmp.ne.s32.totalorder %s126, %s129
      %p135 = scmp.eq.s32.totalorder %s18, 0
      %p136 = por %p134, %p135
      %p137 = scmp.ne.s32.totalorder %s126, %s129
      %p138 = scmp.eq.s32.totalorder %s23, 1
      %p139 = por %p137, %p138
      %p140 = scmp.ne.s32.totalorder %s129, %s130
      %p141 = scmp.eq.s32.totalorder %s23, 0
      %p142 = por %p140, %p141
      %p143 = scmp.ne.s32.totalorder %s129, %s130
      %p144 = scmp.eq.s32.totalorder %s24, 1
      %p145 = por %p143, %p144
      %p147 = scmp.ne.s32.totalorder %s130, %s146
      %p148 = scmp.eq.s32.totalorder %s24, 0
      %p149 = por %p147, %p148
      %p150 = scmp.le.s32.totalorder 1, %s18
      %p151 = scmp.lt.s32.totalorder %s18, 3
      %p152 = pnand %p150, %p151
      %p153 = pneg %p152
      // Predicated region
      $region9: #{tpu_custom_call.1} parent=5 // pred_check
        _
      $region10: #{tpu_custom_call.1} parent=5 // pred_check_branch
        %155 = sbr.rel (%p152) target = $region12
      $region11: #{tpu_custom_call.1} parent=5 // pred_region
        %s156 = ssub.s32 %s18, 1
      $region12: #{tpu_custom_call.1} parent=5 // pred_fallthru
        _
      %p157 = scmp.lt.s32.totalorder %s18, 2
      // Predicated region
      $region13: #{tpu_custom_call.1} parent=5 // pred_check
        %p158 = pneg %p157
      $region14: #{tpu_custom_call.1} parent=5 // pred_check_branch
        %160 = sbr.rel (%p158) target = $region16
      $region15: #{tpu_custom_call.1} parent=5 // pred_region
        // Predicated region
        $region17: #{tpu_custom_call.1} parent=15 // pred_check
          %p161 = pneg %p52
        $region18: #{tpu_custom_call.1} parent=15 // pred_check_branch
          %163 = sbr.rel (%p161) target = $region20
        $region19: #{tpu_custom_call.1} parent=15 // pred_region
          %s164 = sand.u32 %s42, 1
          %s165 = scalar_lea.sflag [#allocation3], %s164
          %s166 = sand.u32 %s42, 1
          %s167 = smul.addr %s166, 2
          %s168 = scalar_lea.vmem [#allocation2], %s167
          %170 = vsyncadd %s165, 0
          %s171 = sadd.s32 %s26, %s25
          %s172 = smul.addr %s171, 2
          %s173 = scalar_lea.hbm %s0, %s172
          %s175 = sshll.u32 %s173, 4
          %s176 = int_to_ptr.hbm [resolvable:$true] %s175
          %s177 = sshll.u32 %s168, 4
          %s178 = int_to_ptr.vmem [resolvable:$true] %s177
          %180 = dma.hbm_to_vmem [thread:$0]  %s176, 32, %s178, %s165
        $region20: #{tpu_custom_call.1} parent=15 // pred_fallthru
          _
        // Predicated region
        $region21: #{tpu_custom_call.1} parent=15 // pred_check
          %p181 = pneg %p80
        $region22: #{tpu_custom_call.1} parent=15 // pred_check_branch
          %183 = sbr.rel (%p181) target = $region24
        $region23: #{tpu_custom_call.1} parent=15 // pred_region
          %s184 = sand.u32 %s18, 1
          %s185 = scalar_lea.sflag [#allocation6], %s184
          %s186 = sand.u32 %s70, 1
          %s187 = smul.addr %s186, 2
          %s188 = scalar_lea.vmem [#allocation5], %s187
          %190 = vsyncadd %s185, 0
          %s191 = sadd.s32 %s26, %s25
          %s192 = smul.addr %s191, 2
          %s193 = scalar_lea.hbm %s1, %s192
          %s195 = sshll.u32 %s193, 4
          %s196 = int_to_ptr.hbm [resolvable:$true] %s195
          %s197 = sshll.u32 %s188, 4
          %s198 = int_to_ptr.vmem [resolvable:$true] %s197
          %200 = dma.hbm_to_vmem [thread:$0]  %s196, 32, %s198, %s185
        $region24: #{tpu_custom_call.1} parent=15 // pred_fallthru
          _
        // Predicated region
        $region25: #{tpu_custom_call.1} parent=15 // pred_check
          %p201 = pneg %p108
        $region26: #{tpu_custom_call.1} parent=15 // pred_check_branch
          %203 = sbr.rel (%p201) target = $region28
        $region27: #{tpu_custom_call.1} parent=15 // pred_region
          %s204 = sand.u32 %s18, 1
          %s205 = scalar_lea.sflag [#allocation6], %s204
          %s206 = sand.u32 %s98, 1
          %s207 = smul.addr %s206, 2
          %s208 = scalar_lea.vmem [#allocation7], %s207
          %210 = vsyncadd %s205, 0
          %s211 = sadd.s32 %s26, %s25
          %s212 = smul.addr %s211, 2
          %s213 = scalar_lea.hbm %s2, %s212
          %s215 = sshll.u32 %s213, 4
          %s216 = int_to_ptr.hbm [resolvable:$true] %s215
          %s217 = sshll.u32 %s208, 4
          %s218 = int_to_ptr.vmem [resolvable:$true] %s217
          %220 = dma.hbm_to_vmem [thread:$0]  %s216, 32, %s218, %s205
        $region28: #{tpu_custom_call.1} parent=15 // pred_fallthru
          _
      $region16: #{tpu_custom_call.1} parent=5 // pred_fallthru
        _
      %p221 = scmp.le.s32.totalorder 1, %s18
      %p222 = scmp.lt.s32.totalorder %s18, 3
      %p223 = pnand %p221, %p222
      %p224 = pneg %p223
      // Predicated region
      $region29: #{tpu_custom_call.1} parent=5 // pred_check
        _
      $region30: #{tpu_custom_call.1} parent=5 // pred_check_branch
        %226 = sbr.rel (%p223) target = $region32
      $region31: #{tpu_custom_call.1} parent=5 // pred_region
        %s227 = ssub.s32 %s18, 1
        %s228 = sand.u32 %s45, 1
        %s229 = scalar_lea.sflag [#allocation3], %s228
        %s230 = sand.u32 %s45, 1
        %s231 = smul.addr %s230, 2
        %s232 = scalar_lea.vmem [#allocation2], %s231
        // Predicated region
        $region33: #{tpu_custom_call.1} parent=31 // pred_check
          %p233 = pneg %p58
        $region34: #{tpu_custom_call.1} parent=31 // pred_check_branch
          %235 = sbr.rel (%p233) target = $region36
        $region35: #{tpu_custom_call.1} parent=31 // pred_region
          %237 = dma.done %s229, 32
        $region36: #{tpu_custom_call.1} parent=31 // pred_fallthru
          _
        %s238 = sand.u32 %s23, 1
        %s239 = scalar_lea.sflag [#allocation6], %s238
        %s240 = sand.u32 %s73, 1
        %s241 = smul.addr %s240, 2
        %s242 = scalar_lea.vmem [#allocation5], %s241
        // Predicated region
        $region37: #{tpu_custom_call.1} parent=31 // pred_check
          %p243 = pneg %p86
        $region38: #{tpu_custom_call.1} parent=31 // pred_check_branch
          %245 = sbr.rel (%p243) target = $region40
        $region39: #{tpu_custom_call.1} parent=31 // pred_region
          %247 = dma.done %s239, 32
        $region40: #{tpu_custom_call.1} parent=31 // pred_fallthru
          _
        %s248 = sand.u32 %s23, 1
        %s249 = scalar_lea.sflag [#allocation6], %s248
        %s250 = sand.u32 %s101, 1
        %s251 = smul.addr %s250, 2
        %s252 = scalar_lea.vmem [#allocation7], %s251
        // Predicated region
        $region41: #{tpu_custom_call.1} parent=31 // pred_check
          %p253 = pneg %p114
        $region42: #{tpu_custom_call.1} parent=31 // pred_check_branch
          %255 = sbr.rel (%p253) target = $region44
        $region43: #{tpu_custom_call.1} parent=31 // pred_region
          %257 = dma.done %s249, 32
        $region44: #{tpu_custom_call.1} parent=31 // pred_fallthru
          _
        %s258 = sand.u32 %s45, 1
        %s259 = scalar_lea.sflag [#allocation3], %s258
        %s260 = sand.u32 %s45, 1
        %s261 = smul.addr %s260, 2
        %s262 = scalar_lea.vmem [#allocation2], %s261
        %p263 = pneg %p58
        %p264 = pneg %p55
        %s265 = sand.u32 %s23, 1
        %s266 = scalar_lea.sflag [#allocation6], %s265
        %s267 = sand.u32 %s73, 1
        %s268 = smul.addr %s267, 2
        %s269 = scalar_lea.vmem [#allocation5], %s268
        %p270 = pneg %p86
        %p271 = pneg %p83
        %s272 = sand.u32 %s23, 1
        %s273 = scalar_lea.sflag [#allocation6], %s272
        %s274 = sand.u32 %s101, 1
        %s275 = smul.addr %s274, 2
        %s276 = scalar_lea.vmem [#allocation7], %s275
        %p277 = pneg %p114
        %p278 = pneg %p111
        %p279 = pneg %p142
        %p280 = pneg %p139
        %s281 = sand.u32 %s129, 1
        %s282 = scalar_lea.sflag [#allocation4], %s281
        %s283 = sand.u32 %s129, 1
        %s284 = smul.addr %s283, 2
        %s285 = scalar_lea.vmem [#allocation8], %s284
        %v286 = vld [vmem:[%s232] sm:$0x3]
        %v287 = vld [vmem:[%s242] sm:$0x3]
        %v288 = vld [vmem:[%s252] sm:$0x3]
        %v289 = vsub.f32 0.0, %v288
        %v290 = vmax.f32 %v289, -10.0
        %v291 = vmin.f32 %v290, 10.0
        %v292 = vmul.f32 %v291, 1.442695
        %v293 = vpow.pop %v292
        %v294 = vsub.f32 %v286, %v287
        %v295 = vmul.f32 %v294, %v293
        %296 = vst [vmem:[%s285] sm:$0x3] %v295
        %p297 = scmp.eq.s32.totalorder %s28, 0
        // Predicated region
        $region45: #{tpu_custom_call.1} parent=31 // pred_check
          %p298 = pneg %p297
        $region46: #{tpu_custom_call.1} parent=31 // pred_check_branch
          %300 = sbr.rel (%p298) target = $region48
        $region47: #{tpu_custom_call.1} parent=31 // pred_region
          %v301 = vld [vmem:[%s232] sm:$0x1]
          %vm302 = vcmask 253952
          %303 = vst.msk [vmem:[%s285] sm:$0x1] %vm302, %v301
        $region48: #{tpu_custom_call.1} parent=31 // pred_fallthru
          _
        %s304 = sand.u32 %s129, 1
        %s305 = scalar_lea.sflag [#allocation4], %s304
        %s306 = sand.u32 %s129, 1
        %s307 = smul.addr %s306, 2
        %s308 = scalar_lea.vmem [#allocation8], %s307
        // Predicated region
        $region49: #{tpu_custom_call.1} parent=31 // pred_check
          %p309 = pneg %p139
        $region50: #{tpu_custom_call.1} parent=31 // pred_check_branch
          %311 = sbr.rel (%p309) target = $region52
        $region51: #{tpu_custom_call.1} parent=31 // pred_region
          %313 = vsyncadd %s305, 0
          %s314 = sadd.s32 %s28, %s27
          %s315 = smul.addr %s314, 2
          %s316 = scalar_lea.hbm %s3, %s315
          %s318 = sshll.u32 %s308, 4
          %s319 = int_to_ptr.vmem [resolvable:$true] %s318
          %s320 = sshll.u32 %s316, 4
          %s321 = int_to_ptr.hbm [resolvable:$true] %s320
          %323 = dma.vmem_to_hbm [thread:$0]  %s319, 32, %s321, %s305
        $region52: #{tpu_custom_call.1} parent=31 // pred_fallthru
          _
      $region32: #{tpu_custom_call.1} parent=5 // pred_fallthru
        _
      %p324 = scmp.le.s32.totalorder 2, %s18
      // Predicated region
      $region53: #{tpu_custom_call.1} parent=5 // pred_check
        %p325 = pneg %p324
      $region54: #{tpu_custom_call.1} parent=5 // pred_check_branch
        %327 = sbr.rel (%p325) target = $region56
      $region55: #{tpu_custom_call.1} parent=5 // pred_region
        %s328 = ssub.s32 %s18, 2
        // Predicated region
        $region57: #{tpu_custom_call.1} parent=55 // pred_check
          %p329 = pneg %p145
        $region58: #{tpu_custom_call.1} parent=55 // pred_check_branch
          %331 = sbr.rel (%p329) target = $region60
        $region59: #{tpu_custom_call.1} parent=55 // pred_region
          %s332 = sand.u32 %s130, 1
          %s333 = scalar_lea.sflag [#allocation4], %s332
          %s334 = sand.u32 %s130, 1
          %s335 = smul.addr %s334, 2
          %s336 = scalar_lea.vmem [#allocation8], %s335
          %338 = dma.done %s333, 32
        $region60: #{tpu_custom_call.1} parent=55 // pred_fallthru
          _
      $region56: #{tpu_custom_call.1} parent=5 // pred_fallthru
        _
    $region6: #{tpu_custom_call.1} parent=1 // loop_footer
      %s22 = sadd.s32 1, %s18
    $region7: #{tpu_custom_call.1} parent=1 // loop_footer_branch
      %17 = sbr.rel target = $region3
    $region8: #{tpu_custom_call.1} parent=1 // loop_exit
      _
    %339 = vsyncpa [#allocation3], 1
    %s340 = scalar_lea.sflag [#allocation3], 1
    %341 = vsyncpa %s340, 1
    %342 = vsyncpa [#allocation6], 1
    %s343 = scalar_lea.sflag [#allocation6], 1
    %344 = vsyncpa %s343, 1
    %345 = vsyncpa [#allocation4], 1
    %s346 = scalar_lea.sflag [#allocation4], 1
    %347 = vsyncpa %s346, 1

</llo_original>
